<compile_context>
chip_gen: v7x
topology: tpu7x:2x2x1
jax: 0.10.0
libtpu: 0.0.40
codegen_flags: <defaults>
</compile_context>

<pallas_src>
import functools

import jax
import jax.numpy as jnp
from jax.experimental import pallas as pl
from jax.experimental.pallas import tpu as pltpu


def _round_up(x, m):
    return ((x + m - 1) // m) * m


def _id_loss_kernel(src_ref, tgt_ref, lbl_ref, out_ref, acc_ref, *,
                    n_true, tile_rows, tiles_per_core):
    c = pl.program_id(0)                      # core-split axis ("parallel")
    i = pl.program_id(1)                      # sequential batch axis ("arbitrary")
    row0 = (c * tiles_per_core + i) * tile_rows   # intended (unclamped) first row

    @pl.when(i == 0)
    def _():
        acc_ref[...] = jnp.zeros_like(acc_ref)

    x1 = src_ref[...].astype(jnp.float32)     # (T, D)
    x2 = tgt_ref[...].astype(jnp.float32)     # (T, D)
    y = lbl_ref[...]                          # (T, 1) f32, values in {+1, -1}

    dot = jnp.sum(x1 * x2, axis=-1, keepdims=True)   # (T, 1)
    s1 = jnp.sum(x1 * x1, axis=-1, keepdims=True)    # squared norms
    s2 = jnp.sum(x2 * x2, axis=-1, keepdims=True)

    # torch clamps the norms at eps=1e-8; clamping the squared norms at eps^2 and
    # using rsqrt (EUP slot) is mathematically identical.
    eps2 = jnp.float32(1e-16)
    cos = dot * jax.lax.rsqrt(jnp.maximum(s1, eps2)) * jax.lax.rsqrt(jnp.maximum(s2, eps2))

    # CosineEmbeddingLoss, margin = 0:  y=+1 -> 1 - cos ; y=-1 -> max(0, cos)
    per_sample = jnp.where(y > 0, 1.0 - cos, jnp.maximum(cos, 0.0))   # (T, 1)

    is_full = row0 + tile_rows <= n_true

    @pl.when(is_full)
    def _():
        acc_ref[...] += per_sample

    @pl.when(jnp.logical_not(is_full))
    def _():
        # Ragged / clamped-overflow tile: rows >= n_true hold stale VMEM data
        # (possibly NaN/Inf).  The mask is applied AFTER all arithmetic and
        # jnp.where selects (does not multiply), so garbage never reaches acc.
        row = row0 + jax.lax.broadcasted_iota(jnp.int32, (tile_rows, 1), 0)
        acc_ref[...] += jnp.where(row < n_true, per_sample, jnp.float32(0.0))

    @pl.when(i == pl.num_programs(1) - 1)
    def _():
        partial = jnp.sum(acc_ref[...])               # single reduction per core
        out_ref[...] = jnp.broadcast_to(partial, out_ref.shape)


def id_loss_pallas(id_source, id_target, target, id_coef=1.0, *,
                   tile_rows=None, num_cores=2, num_buffers=2,
                   vmem_limit_bytes=48 * 1024 * 1024):
    """Returns (total_loss, {'id_loss': L_id}) matching IDLoss.forward semantics."""
    n, d = id_source.shape
    assert id_target.shape == (n, d)
    src_item = jnp.dtype(id_source.dtype).itemsize
    tgt_item = jnp.dtype(id_target.dtype).itemsize
    num_cores = max(1, int(num_cores))
    num_buffers = max(2, int(num_buffers))

    # Per-row VMEM bytes: pipelined data/label blocks (label block is padded to
    # 128 lanes), f32 elementwise temporaries, and the lane-padded accumulator.
    per_row_vmem = (num_buffers * (d * (src_item + tgt_item) + 128 * 4)
                    + 3 * d * 4 + 128 * 4)

    if tile_rows is None:
        payload_target = 4 * 1024 * 1024     # ~4 MiB of src+tgt per grid step
        tile_rows = payload_target // max(1, d * (src_item + tgt_item))
    # Clamp so everything fits ~75% of the VMEM limit (headroom for compiler temps).
    tile_rows = min(int(tile_rows), max(8, (3 * vmem_limit_bytes // 4) // per_row_vmem))
    tile_rows = max(8, (tile_rows // 8) * 8)
    tile_rows = min(tile_rows, _round_up(n, 8))

    n_blocks = pl.cdiv(n, tile_rows)
    tiles_per_core = pl.cdiv(n_blocks, num_cores)

    lbl = target.reshape(n, 1).astype(jnp.float32)

    def _row_block(c, i):
        # Intended block c*tiles_per_core+i; clamp overflow blocks (odd n_blocks)
        # to a valid block -- the kernel fully masks them.
        return jnp.minimum(c * tiles_per_core + i, n_blocks - 1)

    def _data_spec():
        kwargs = {}
        if num_buffers != 2:
            kwargs["pipeline_mode"] = pl.Buffered(num_buffers)
        return pl.BlockSpec((tile_rows, d), lambda c, i: (_row_block(c, i), 0), **kwargs)

    kernel = functools.partial(_id_loss_kernel, n_true=n, tile_rows=tile_rows,
                               tiles_per_core=tiles_per_core)

    out = pl.pallas_call(
        kernel,
        out_shape=jax.ShapeDtypeStruct((num_cores, 8, 128), jnp.float32),
        grid_spec=pltpu.PrefetchScalarGridSpec(
            num_scalar_prefetch=0,
            grid=(num_cores, tiles_per_core),
            in_specs=[
                _data_spec(),
                _data_spec(),
                pl.BlockSpec((tile_rows, 1), lambda c, i: (_row_block(c, i), 0)),
            ],
            out_specs=pl.BlockSpec((1, 8, 128), lambda c, i: (c, 0, 0)),
            scratch_shapes=[pltpu.VMEM((tile_rows, 1), jnp.float32)],
        ),
        compiler_params=pltpu.CompilerParams(
            dimension_semantics=("parallel", "arbitrary"),
            vmem_limit_bytes=int(vmem_limit_bytes),
        ),
        cost_estimate=pl.CostEstimate(
            flops=6 * n * d,
            transcendentals=2 * n,
            bytes_accessed=n * d * (src_item + tgt_item) + n * 4 + num_cores * 8 * 128 * 4,
        ),
    )(id_source, id_target, lbl)

    l_id = jnp.sum(out[:, 0, 0]) / jnp.float32(n)
    total_loss = id_coef * l_id
    # stop_gradient mirrors the .detach() on the logged value.
    return total_loss, {"id_loss": jax.lax.stop_gradient(l_id)}


def _ref_id_loss(x1, x2, y):
    # Pure-JAX reference (same math as torch CosineEmbeddingLoss, margin=0).
    x1 = x1.astype(jnp.float32)
    x2 = x2.astype(jnp.float32)
    dot = jnp.sum(x1 * x2, axis=-1)
    n1 = jnp.linalg.norm(x1, axis=-1)
    n2 = jnp.linalg.norm(x2, axis=-1)
    cos = dot / (jnp.maximum(n1, 1e-8) * jnp.maximum(n2, 1e-8))
    per = jnp.where(y > 0, 1.0 - cos, jnp.maximum(cos, 0.0))
    return jnp.mean(per)


if __name__ == "__main__":
    key = jax.random.PRNGKey(0)

    # --- Test 1: small aligned batch, single block (2nd core-slot fully masked) ---
    k1, k2, k3, key = jax.random.split(key, 4)
    N, D = 8, 128
    src = jax.random.normal(k1, (N, D), dtype=jnp.float32)
    tgt = jax.random.normal(k2, (N, D), dtype=jnp.float32)
    lbl = jnp.where(jax.random.bernoulli(k3, 0.5, (N,)), 1.0, -1.0).astype(jnp.float32)

    total, aux = id_loss_pallas(src, tgt, lbl, id_coef=1.0)
    jax.block_until_ready(total)
    jax.block_until_ready(aux["id_loss"])
    ref = _ref_id_loss(src, tgt, lbl)
    assert jnp.allclose(total, ref, atol=1e-5, rtol=1e-4), (total, ref)
    assert jnp.allclose(aux["id_loss"], ref, atol=1e-5, rtol=1e-4), (aux["id_loss"], ref)

    # --- Test 2: ragged batch, several blocks per core (forced tiny tile) ---------
    # Exercises the partial trailing block mask and the clamped overflow block.
    k1, k2, k3, key = jax.random.split(key, 4)
    N2, D2 = 20, 128
    src2 = jax.random.normal(k1, (N2, D2), dtype=jnp.float32)
    tgt2 = jax.random.normal(k2, (N2, D2), dtype=jnp.float32)
    lbl2 = jnp.where(jax.random.bernoulli(k3, 0.5, (N2,)), 1.0, -1.0).astype(jnp.float32)

    total2, aux2 = id_loss_pallas(src2, tgt2, lbl2, id_coef=2.0, tile_rows=8)
    jax.block_until_ready(total2)
    ref2 = _ref_id_loss(src2, tgt2, lbl2)
    assert jnp.allclose(aux2["id_loss"], ref2, atol=1e-5, rtol=1e-4), (aux2["id_loss"], ref2)
    assert jnp.allclose(total2, 2.0 * ref2, atol=1e-5, rtol=1e-4), (total2, ref2)

    # --- Test 3: bfloat16 inputs (HBM-traffic halving path), f32 math in-kernel ---
    k1, k2, k3, key = jax.random.split(key, 4)
    N3, D3 = 24, 256
    src3 = jax.random.normal(k1, (N3, D3), dtype=jnp.float32).astype(jnp.bfloat16)
    tgt3 = jax.random.normal(k2, (N3, D3), dtype=jnp.float32).astype(jnp.bfloat16)
    lbl3 = jnp.where(jax.random.bernoulli(k3, 0.5, (N3,)), 1.0, -1.0).astype(jnp.float32)

    total3, aux3 = id_loss_pallas(src3, tgt3, lbl3, id_coef=1.0)
    jax.block_until_ready(total3)
    ref3 = _ref_id_loss(src3, tgt3, lbl3)
    assert jnp.allclose(aux3["id_loss"], ref3, atol=1e-4, rtol=1e-3), (aux3["id_loss"], ref3)

    print("KERNEL_OK")
</pallas_src>

<mosaic_0001>
module attributes {stable_mosaic.version = 11 : i64} {
  func.func @_id_loss_kernel(%arg0: i32, %arg1: i32, %arg2: memref<8x128xf32, #tpu.memory_space<vmem>>, %arg3: memref<8x128xf32, #tpu.memory_space<vmem>>, %arg4: memref<8x1xf32, #tpu.memory_space<vmem>>, %arg5: memref<1x8x128xf32, #tpu.memory_space<vmem>>, %arg6: memref<8x1xf32, #tpu.memory_space<vmem>>) attributes {dimension_semantics = [#tpu.dimension_semantics<parallel>, #tpu.dimension_semantics<arbitrary>], iteration_bounds = array<i64: 2, 1>, scalar_prefetch = 0 : i64, scratch_operands = 1 : i64, tpu.core_type = #tpu.core_type<tc>, window_params = [{transform_indices = @transform_0, window_bounds = array<i64: 8, 128>}, {transform_indices = @transform_1, window_bounds = array<i64: 8, 128>}, {transform_indices = @transform_2, window_bounds = array<i64: 8, 1>}, {transform_indices = @transform_3, window_bounds = array<i64: 1, 8, 128>}]} {
    %c1_i32 = arith.constant 1 : i32
    %0 = arith.muli %arg0, %c1_i32 : i32
    %1 = arith.addi %0, %arg1 : i32
    %c8_i32 = arith.constant 8 : i32
    %2 = arith.muli %1, %c8_i32 : i32
    %c0_i32 = arith.constant 0 : i32
    %3 = arith.cmpi eq, %arg1, %c0_i32 : i32
    %4 = arith.extui %3 : i1 to i32
    %c0_i32_0 = arith.constant 0 : i32
    %5 = arith.cmpi ne, %4, %c0_i32_0 : i32
    scf.if %5 {
      %cst_19 = arith.constant 0.000000e+00 : f32
      %43 = vector.broadcast %cst_19 : f32 to vector<8x1xf32>
      %c0_20 = arith.constant 0 : index
      %c0_21 = arith.constant 0 : index
      %44 = vector.load %arg6[%c0_20, %c0_21] : memref<8x1xf32, #tpu.memory_space<vmem>>, vector<8x1xf32>
      tpu.vector_store %arg6[%c0_20, %c0_21], %43 {strides = array<i32>} : memref<8x1xf32, #tpu.memory_space<vmem>>, vector<8x1xf32>,
    } else {
    }
    %c0 = arith.constant 0 : index
    %c0_1 = arith.constant 0 : index
    %6 = vector.load %arg2[%c0, %c0_1] : memref<8x128xf32, #tpu.memory_space<vmem>>, vector<8x128xf32>
    %c0_2 = arith.constant 0 : index
    %c0_3 = arith.constant 0 : index
    %7 = vector.load %arg3[%c0_2, %c0_3] : memref<8x128xf32, #tpu.memory_space<vmem>>, vector<8x128xf32>
    %c0_4 = arith.constant 0 : index
    %c0_5 = arith.constant 0 : index
    %8 = vector.load %arg4[%c0_4, %c0_5] : memref<8x1xf32, #tpu.memory_space<vmem>>, vector<8x1xf32>
    %9 = arith.mulf %6, %7 : vector<8x128xf32>
    %cst = arith.constant dense<0.000000e+00> : vector<8xf32>
    %10 = vector.multi_reduction <add>, %9, %cst [1] : vector<8x128xf32> to vector<8xf32>
    %11 = vector.shape_cast %10 : vector<8xf32> to vector<8x1xf32>
    %12 = arith.mulf %6, %6 : vector<8x128xf32>
    %cst_6 = arith.constant dense<0.000000e+00> : vector<8xf32>
    %13 = vector.multi_reduction <add>, %12, %cst_6 [1] : vector<8x128xf32> to vector<8xf32>
    %14 = vector.shape_cast %13 : vector<8xf32> to vector<8x1xf32>
    %15 = arith.mulf %7, %7 : vector<8x128xf32>
    %cst_7 = arith.constant dense<0.000000e+00> : vector<8xf32>
    %16 = vector.multi_reduction <add>, %15, %cst_7 [1] : vector<8x128xf32> to vector<8xf32>
    %17 = vector.shape_cast %16 : vector<8xf32> to vector<8x1xf32>
    %cst_8 = arith.constant 1.000000e-16 : f32
    %18 = vector.broadcast %cst_8 : f32 to vector<8x1xf32>
    %19 = arith.maximumf %14, %18 : vector<8x1xf32>
    %20 = math.rsqrt %19 : vector<8x1xf32>
    %21 = arith.mulf %11, %20 : vector<8x1xf32>
    %cst_9 = arith.constant 1.000000e-16 : f32
    %22 = vector.broadcast %cst_9 : f32 to vector<8x1xf32>
    %23 = arith.maximumf %17, %22 : vector<8x1xf32>
    %24 = math.rsqrt %23 : vector<8x1xf32>
    %25 = arith.mulf %21, %24 : vector<8x1xf32>
    %cst_10 = arith.constant 0.000000e+00 : f32
    %26 = vector.broadcast %cst_10 : f32 to vector<8x1xf32>
    %27 = arith.cmpf ogt, %8, %26 : vector<8x1xf32>
    %cst_11 = arith.constant 1.000000e+00 : f32
    %28 = vector.broadcast %cst_11 : f32 to vector<8x1xf32>
    %29 = arith.subf %28, %25 : vector<8x1xf32>
    %cst_12 = arith.constant 0.000000e+00 : f32
    %30 = vector.broadcast %cst_12 : f32 to vector<8x1xf32>
    %31 = arith.maximumf %25, %30 : vector<8x1xf32>
    %32 = arith.select %27, %29, %31 : vector<8x1xi1>, vector<8x1xf32>
    %c8_i32_13 = arith.constant 8 : i32
    %33 = arith.addi %2, %c8_i32_13 : i32
    %c8_i32_14 = arith.constant 8 : i32
    %34 = arith.cmpi sle, %33, %c8_i32_14 : i32
    %35 = arith.extui %34 : i1 to i32
    %c0_i32_15 = arith.constant 0 : i32
    %36 = arith.cmpi ne, %35, %c0_i32_15 : i32
    scf.if %36 {
      %c0_19 = arith.constant 0 : index
      %c0_20 = arith.constant 0 : index
      %43 = vector.load %arg6[%c0_19, %c0_20] : memref<8x1xf32, #tpu.memory_space<vmem>>, vector<8x1xf32>
      %44 = arith.addf %43, %32 : vector<8x1xf32>
      %c0_21 = arith.constant 0 : index
      %c0_22 = arith.constant 0 : index
      %45 = vector.load %arg6[%c0_21, %c0_22] : memref<8x1xf32, #tpu.memory_space<vmem>>, vector<8x1xf32>
      tpu.vector_store %arg6[%c0_21, %c0_22], %44 {strides = array<i32>} : memref<8x1xf32, #tpu.memory_space<vmem>>, vector<8x1xf32>,
    } else {
    }
    %true = arith.constant true
    %37 = arith.xori %34, %true : i1
    %38 = arith.extui %37 : i1 to i32
    %c0_i32_16 = arith.constant 0 : i32
    %39 = arith.cmpi ne, %38, %c0_i32_16 : i32
    scf.if %39 {
      %43 = tpu.iota {dimensions = array<i32: 0>} : vector<8x1xi32>
      %44 = vector.broadcast %2 : i32 to vector<8x1xi32>
      %45 = arith.addi %44, %43 : vector<8x1xi32>
      %c0_19 = arith.constant 0 : index
      %c0_20 = arith.constant 0 : index
      %46 = vector.load %arg6[%c0_19, %c0_20] : memref<8x1xf32, #tpu.memory_space<vmem>>, vector<8x1xf32>
      %c8_i32_21 = arith.constant 8 : i32
      %47 = vector.broadcast %c8_i32_21 : i32 to vector<8x1xi32>
      %48 = arith.cmpi slt, %45, %47 : vector<8x1xi32>
      %cst_22 = arith.constant 0.000000e+00 : f32
      %49 = vector.broadcast %cst_22 : f32 to vector<8x1xf32>
      %50 = arith.select %48, %32, %49 : vector<8x1xi1>, vector<8x1xf32>
      %51 = arith.addf %46, %50 : vector<8x1xf32>
      %c0_23 = arith.constant 0 : index
      %c0_24 = arith.constant 0 : index
      %52 = vector.load %arg6[%c0_23, %c0_24] : memref<8x1xf32, #tpu.memory_space<vmem>>, vector<8x1xf32>
      tpu.vector_store %arg6[%c0_23, %c0_24], %51 {strides = array<i32>} : memref<8x1xf32, #tpu.memory_space<vmem>>, vector<8x1xf32>,
    } else {
    }
    %c0_i32_17 = arith.constant 0 : i32
    %40 = arith.cmpi eq, %arg1, %c0_i32_17 : i32
    %41 = arith.extui %40 : i1 to i32
    %c0_i32_18 = arith.constant 0 : i32
    %42 = arith.cmpi ne, %41, %c0_i32_18 : i32
    scf.if %42 {
      %c0_19 = arith.constant 0 : index
      %c0_20 = arith.constant 0 : index
      %43 = vector.load %arg6[%c0_19, %c0_20] : memref<8x1xf32, #tpu.memory_space<vmem>>, vector<8x1xf32>
      %44 = vector.shape_cast %43 : vector<8x1xf32> to vector<1x8x1xf32>
      %cst_21 = arith.constant dense<0.000000e+00> : vector<1xf32>
      %45 = vector.multi_reduction <add>, %44, %cst_21 [1, 2] : vector<1x8x1xf32> to vector<1xf32>
      %46 = vector.shape_cast %45 : vector<1xf32> to vector<1x1x1xf32>
      %47 = vector.extract %46[0, 0, 0] : f32 from vector<1x1x1xf32>
      %48 = vector.broadcast %47 : f32 to vector<1x8x128xf32>
      %c0_22 = arith.constant 0 : index
      %c0_23 = arith.constant 0 : index
      %c0_24 = arith.constant 0 : index
      %49 = vector.load %arg5[%c0_22, %c0_23, %c0_24] : memref<1x8x128xf32, #tpu.memory_space<vmem>>, vector<1x8x128xf32>
      tpu.vector_store %arg5[%c0_22, %c0_23, %c0_24], %48 {strides = array<i32>} : memref<1x8x128xf32, #tpu.memory_space<vmem>>, vector<1x8x128xf32>,
    } else {
    }
    return
  }
  func.func @transform_0(%arg0: i32, %arg1: i32) -> (i32, i32) {
    %c1_i32 = arith.constant 1 : i32
    %0 = arith.muli %arg0, %c1_i32 : i32
    %1 = arith.addi %0, %arg1 : i32
    %c0_i32 = arith.constant 0 : i32
    %2 = arith.minsi %1, %c0_i32 : i32
    %c0_i32_0 = arith.constant 0 : i32
    %c0_i32_1 = arith.constant 0 : i32
    return %2, %c0_i32_0 : i32, i32
  }
  func.func @transform_1(%arg0: i32, %arg1: i32) -> (i32, i32) {
    %c1_i32 = arith.constant 1 : i32
    %0 = arith.muli %arg0, %c1_i32 : i32
    %1 = arith.addi %0, %arg1 : i32
    %c0_i32 = arith.constant 0 : i32
    %2 = arith.minsi %1, %c0_i32 : i32
    %c0_i32_0 = arith.constant 0 : i32
    %c0_i32_1 = arith.constant 0 : i32
    return %2, %c0_i32_0 : i32, i32
  }
  func.func @transform_2(%arg0: i32, %arg1: i32) -> (i32, i32) {
    %c1_i32 = arith.constant 1 : i32
    %0 = arith.muli %arg0, %c1_i32 : i32
    %1 = arith.addi %0, %arg1 : i32
    %c0_i32 = arith.constant 0 : i32
    %2 = arith.minsi %1, %c0_i32 : i32
    %c0_i32_0 = arith.constant 0 : i32
    %c0_i32_1 = arith.constant 0 : i32
    return %2, %c0_i32_0 : i32, i32
  }
  func.func @transform_3(%arg0: i32, %arg1: i32) -> (i32, i32, i32) {
    %c0_i32 = arith.constant 0 : i32
    %c0_i32_0 = arith.constant 0 : i32
    %c0_i32_1 = arith.constant 0 : i32
    return %arg0, %c0_i32, %c0_i32_0 : i32, i32, i32
  }
}

</mosaic_0001>

<llo_original>
// kernel: tpu_custom_call.1
$region0: #{tpu_custom_call.1}
  #allocation0 [shape = 'u32[]', space=smem, size = 0x4, offset = 0x4, fixed_abs, tag = 'smem constant byte address 0x4 - core index']
  #allocation1 [shape = 'u32[144,128]{1,0:T(1,128)}', space=vmem, size = 0x12000, scoped, tag = 'internal scratch']
  #allocation2 [shape = 'f32[8,1]{1,0:T(8,128)}', space=vmem, size = 0x1000, scoped, tag = 'scratch operand']
  %s0 = inlined_call_operand.vmem [shape: f32[8,128], index: 0, kind: input, shape index: {}]
  %s1 = inlined_call_operand.hbm [shape: f32[8,128], index: 1, kind: input, shape index: {}]
  %s2 = inlined_call_operand.vmem [shape: f32[8,1], index: 2, kind: input, shape index: {}]
  %s3 = inlined_call_operand.hbm [shape: f32[2,8,128], index: 3, kind: output, shape index: {}]
  %s4 = sld [smem:[#allocation0]]
  $region65: #{tpu_custom_call.1} parent=0
    _
  %s6 = ssub.s32 1, %s4
  %s7 = scalar_select 0, %s6, %s4
  $region1: #{tpu_custom_call.1} parent=0
    #allocation3 [shape = 'u8[8192]{0}', space=vmem, size = 0x2000, scoped, tag = 'input window, operand 1']
    #allocation4 [shape = 's32[2]{0}', space=sflag, size = 0x8, scoped, tag = 'scoped memory for tpu_custom_call.1']
    #allocation5 [shape = 's32[2]{0}', space=sflag, size = 0x8, scoped, tag = 'scoped memory for tpu_custom_call.1']
    #allocation6 [shape = 'u8[8192]{0}', space=vmem, size = 0x2000, scoped, tag = 'output window, operand 0']
    %8 = vsyncpa [#allocation4], 0
    %s9 = scalar_lea.sflag [#allocation4], 1
    %10 = vsyncpa %s9, 0
    %11 = vsyncpa [#allocation5], 0
    %s12 = scalar_lea.sflag [#allocation5], 1
    %13 = vsyncpa %s12, 0
    loop: start=0, step=1, limit=4
    $region2: #{tpu_custom_call.1} parent=1 // loop_pre_header
      _
    $region3: #{tpu_custom_call.1} parent=1 // loop_header
      %s15 = sphi 0, %s19
      %p16 = scmp.ge.s32.totalorder %s15, 4
      %s22 = sphi 0, %s34
      %s23 = sphi 0, %s30
      %s24 = sphi 0, %s22
      %s25 = sphi 0, %s23
      %s26 = sphi 0, %s24
      %s27 = sphi 0, %s25
      %s43 = sphi 0, %s45
      %s46 = sphi 0, %s43
      %s47 = sphi 0, %s46
      %s63 = sphi 0, %s47
      %s75 = sphi 0, %s77
      %s78 = sphi 0, %s75
      %s79 = sphi 0, %s78
      %s95 = sphi 0, %s79
      %s107 = sphi 0, %s109
      %s110 = sphi 0, %s107
      %s111 = sphi 0, %s110
      %s127 = sphi 0, %s111
      %s133 = sphi 0, %s135
      %s136 = sphi 0, %s133
      %s137 = sphi 0, %s136
      %s153 = sphi 0, %s137
    $region4: #{tpu_custom_call.1} parent=1 // loop_header_branch
      %18 = sbr.rel (%p16) target = $region8
    $region5: #{tpu_custom_call.1} parent=1 // loop_body
      %s20 = ssub.s32 %s15, 1
      %s21 = ssub.s32 %s15, 2
      %s28 = sadd.s32 1, %s23
      %p29 = scmp.ge.s32.totalorder %s28, 1
      %s30 = scalar_select %p29, 0, %s28
      %s31 = sadd.s32 1, %s22
      %s32 = scalar_select %p29, %s31, %s22
      %p33 = scmp.ge.s32.totalorder %s32, 2
      %s34 = scalar_select %p33, 0, %s32
      %s35 = sadd.s32 %s22, %s23
      %p36 = scmp.lt.s32.totalorder %s35, 0
      %s37 = scalar_select %p36, %s35, 0
      %s38 = sadd.s32 %s34, %s30
      %p39 = scmp.lt.s32.totalorder %s38, 0
      %s40 = scalar_select %p39, %s38, 0
      %s41 = ssub.s32 %s37, %s40
      %p42 = scmp.eq.s32.totalorder %s41, 0
      %s44 = sadd.s32 %s43, 1
      %s45 = scalar_select %p42, %s43, %s44
      %p48 = pneg %p42
      %p49 = scmp.eq.s32.totalorder %s15, 1
      %p50 = por %p48, %p49
      %p51 = scmp.ne.s32.totalorder %s43, %s46
      %p52 = scmp.eq.s32.totalorder %s15, 0
      %p53 = por %p51, %p52
      %p54 = scmp.ne.s32.totalorder %s43, %s46
      %p55 = scmp.eq.s32.totalorder %s20, 1
      %p56 = por %p54, %p55
      %p57 = scmp.ne.s32.totalorder %s46, %s47
      %p58 = scmp.eq.s32.totalorder %s20, 0
      %p59 = por %p57, %p58
      %p60 = scmp.ne.s32.totalorder %s46, %s47
      %p61 = scmp.eq.s32.totalorder %s21, 1
      %p62 = por %p60, %p61
      %p64 = scmp.ne.s32.totalorder %s47, %s63
      %p65 = scmp.eq.s32.totalorder %s21, 0
      %p66 = por %p64, %p65
      %s67 = sadd.s32 %s22, %s23
      %p68 = scmp.lt.s32.totalorder %s67, 0
      %s69 = scalar_select %p68, %s67, 0
      %s70 = sadd.s32 %s34, %s30
      %p71 = scmp.lt.s32.totalorder %s70, 0
      %s72 = scalar_select %p71, %s70, 0
      %s73 = ssub.s32 %s69, %s72
      %p74 = scmp.eq.s32.totalorder %s73, 0
      %s76 = sadd.s32 %s75, 1
      %s77 = scalar_select %p74, %s75, %s76
      %p80 = pneg %p74
      %p81 = scmp.eq.s32.totalorder %s15, 1
      %p82 = por %p80, %p81
      %p83 = scmp.ne.s32.totalorder %s75, %s78
      %p84 = scmp.eq.s32.totalorder %s15, 0
      %p85 = por %p83, %p84
      %p86 = scmp.ne.s32.totalorder %s75, %s78
      %p87 = scmp.eq.s32.totalorder %s20, 1
      %p88 = por %p86, %p87
      %p89 = scmp.ne.s32.totalorder %s78, %s79
      %p90 = scmp.eq.s32.totalorder %s20, 0
      %p91 = por %p89, %p90
      %p92 = scmp.ne.s32.totalorder %s78, %s79
      %p93 = scmp.eq.s32.totalorder %s21, 1
      %p94 = por %p92, %p93
      %p96 = scmp.ne.s32.totalorder %s79, %s95
      %p97 = scmp.eq.s32.totalorder %s21, 0
      %p98 = por %p96, %p97
      %s99 = sadd.s32 %s22, %s23
      %p100 = scmp.lt.s32.totalorder %s99, 0
      %s101 = scalar_select %p100, %s99, 0
      %s102 = sadd.s32 %s34, %s30
      %p103 = scmp.lt.s32.totalorder %s102, 0
      %s104 = scalar_select %p103, %s102, 0
      %s105 = ssub.s32 %s101, %s104
      %p106 = scmp.eq.s32.totalorder %s105, 0
      %s108 = sadd.s32 %s107, 1
      %s109 = scalar_select %p106, %s107, %s108
      %p112 = pneg %p106
      %p113 = scmp.eq.s32.totalorder %s15, 1
      %p114 = por %p112, %p113
      %p115 = scmp.ne.s32.totalorder %s107, %s110
      %p116 = scmp.eq.s32.totalorder %s15, 0
      %p117 = por %p115, %p116
      %p118 = scmp.ne.s32.totalorder %s107, %s110
      %p119 = scmp.eq.s32.totalorder %s20, 1
      %p120 = por %p118, %p119
      %p121 = scmp.ne.s32.totalorder %s110, %s111
      %p122 = scmp.eq.s32.totalorder %s20, 0
      %p123 = por %p121, %p122
      %p124 = scmp.ne.s32.totalorder %s110, %s111
      %p125 = scmp.eq.s32.totalorder %s21, 1
      %p126 = por %p124, %p125
      %p128 = scmp.ne.s32.totalorder %s111, %s127
      %p129 = scmp.eq.s32.totalorder %s21, 0
      %p130 = por %p128, %p129
      %s131 = ssub.s32 %s22, %s34
      %p132 = scmp.eq.s32.totalorder %s131, 0
      %s134 = sadd.s32 %s133, 1
      %s135 = scalar_select %p132, %s133, %s134
      %p138 = pneg %p132
      %p139 = scmp.eq.s32.totalorder %s15, 1
      %p140 = por %p138, %p139
      %p141 = scmp.ne.s32.totalorder %s133, %s136
      %p142 = scmp.eq.s32.totalorder %s15, 0
      %p143 = por %p141, %p142
      %p144 = scmp.ne.s32.totalorder %s133, %s136
      %p145 = scmp.eq.s32.totalorder %s20, 1
      %p146 = por %p144, %p145
      %p147 = scmp.ne.s32.totalorder %s136, %s137
      %p148 = scmp.eq.s32.totalorder %s20, 0
      %p149 = por %p147, %p148
      %p150 = scmp.ne.s32.totalorder %s136, %s137
      %p151 = scmp.eq.s32.totalorder %s21, 1
      %p152 = por %p150, %p151
      %p154 = scmp.ne.s32.totalorder %s137, %s153
      %p155 = scmp.eq.s32.totalorder %s21, 0
      %p156 = por %p154, %p155
      %p157 = scmp.le.s32.totalorder 1, %s15
      %p158 = scmp.lt.s32.totalorder %s15, 3
      %p159 = pnand %p157, %p158
      %p160 = pneg %p159
      // Predicated region
      $region9: #{tpu_custom_call.1} parent=5 // pred_check
        _
      $region10: #{tpu_custom_call.1} parent=5 // pred_check_branch
        %162 = sbr.rel (%p159) target = $region12
      $region11: #{tpu_custom_call.1} parent=5 // pred_region
        %s163 = ssub.s32 %s15, 1
      $region12: #{tpu_custom_call.1} parent=5 // pred_fallthru
        _
      %p164 = scmp.lt.s32.totalorder %s15, 2
      // Predicated region
      $region13: #{tpu_custom_call.1} parent=5 // pred_check
        %p165 = pneg %p164
      $region14: #{tpu_custom_call.1} parent=5 // pred_check_branch
        %167 = sbr.rel (%p165) target = $region16
      $region15: #{tpu_custom_call.1} parent=5 // pred_region
        // Predicated region
        $region17: #{tpu_custom_call.1} parent=15 // pred_check
          %p168 = pneg %p53
        $region18: #{tpu_custom_call.1} parent=15 // pred_check_branch
          %170 = sbr.rel (%p168) target = $region20
        $region19: #{tpu_custom_call.1} parent=15 // pred_region
          %s171 = sadd.s32 %s22, %s23
          %p172 = scmp.lt.s32.totalorder %s171, 0
          %s173 = scalar_select %p172, %s171, 0
          %p174 = scmp.lt.s32.totalorder %s173, 0
          %s175 = scalar_select %p174, %s173, 0
          %s176 = smul.addr %s175, 8
          %s177 = scalar_lea.vmem %s0, %s176
          %s178 = sadd.s32 %s22, %s23
          %p179 = scmp.lt.s32.totalorder %s178, 0
          %s180 = scalar_select %p179, %s178, 0
        $region20: #{tpu_custom_call.1} parent=15 // pred_fallthru
          _
        // Predicated region
        $region21: #{tpu_custom_call.1} parent=15 // pred_check
          %p181 = pneg %p85
        $region22: #{tpu_custom_call.1} parent=15 // pred_check_branch
          %183 = sbr.rel (%p181) target = $region24
        $region23: #{tpu_custom_call.1} parent=15 // pred_region
          %s184 = sand.u32 %s75, 1
          %s185 = scalar_lea.sflag [#allocation4], %s184
          %s186 = sand.u32 %s75, 1
          %s187 = smul.addr %s186, 8
          %s188 = scalar_lea.vmem [#allocation3], %s187
          %s189 = sadd.s32 %s22, %s23
          %p190 = scmp.lt.s32.totalorder %s189, 0
          %s191 = scalar_select %p190, %s189, 0
          %s193 = ssub.s32 128, 128
          %194 = vsyncadd %s185, %s193
          %s195 = smul.addr %s191, 128
          %s196 = scalar_lea.hbm %s1, %s195
          %s198 = sshll.u32 %s188, 4
          %s199 = int_to_ptr.vmem [resolvable:$true] %s198
          %201 = dma.hbm_to_vmem [thread:$0]  %s196, 128, %s199, %s185
        $region24: #{tpu_custom_call.1} parent=15 // pred_fallthru
          _
        // Predicated region
        $region25: #{tpu_custom_call.1} parent=15 // pred_check
          %p202 = pneg %p117
        $region26: #{tpu_custom_call.1} parent=15 // pred_check_branch
          %204 = sbr.rel (%p202) target = $region28
        $region27: #{tpu_custom_call.1} parent=15 // pred_region
          %s205 = sadd.s32 %s22, %s23
          %p206 = scmp.lt.s32.totalorder %s205, 0
          %s207 = scalar_select %p206, %s205, 0
          %p208 = scmp.lt.s32.totalorder %s207, 0
          %s209 = scalar_select %p208, %s207, 0
          %s210 = smul.addr %s209, 8
          %s211 = scalar_lea.vmem %s2, %s210
          %s212 = sadd.s32 %s22, %s23
          %p213 = scmp.lt.s32.totalorder %s212, 0
          %s214 = scalar_select %p213, %s212, 0
        $region28: #{tpu_custom_call.1} parent=15 // pred_fallthru
          _
      $region16: #{tpu_custom_call.1} parent=5 // pred_fallthru
        _
      %p215 = scmp.le.s32.totalorder 1, %s15
      %p216 = scmp.lt.s32.totalorder %s15, 3
      %p217 = pnand %p215, %p216
      %p218 = pneg %p217
      // Predicated region
      $region29: #{tpu_custom_call.1} parent=5 // pred_check
        _
      $region30: #{tpu_custom_call.1} parent=5 // pred_check_branch
        %220 = sbr.rel (%p217) target = $region32
      $region31: #{tpu_custom_call.1} parent=5 // pred_region
        %s221 = ssub.s32 %s15, 1
        %s222 = sand.u32 %s78, 1
        %s223 = scalar_lea.sflag [#allocation4], %s222
        %s224 = sand.u32 %s78, 1
        %s225 = smul.addr %s224, 8
        %s226 = scalar_lea.vmem [#allocation3], %s225
        // Predicated region
        $region33: #{tpu_custom_call.1} parent=31 // pred_check
          %p227 = pneg %p91
        $region34: #{tpu_custom_call.1} parent=31 // pred_check_branch
          %229 = sbr.rel (%p227) target = $region36
        $region35: #{tpu_custom_call.1} parent=31 // pred_region
          %230 = dma.done %s223, 128
        $region36: #{tpu_custom_call.1} parent=31 // pred_fallthru
          _
        %s231 = sadd.s32 %s24, %s25
        %p232 = scmp.lt.s32.totalorder %s231, 0
        %s233 = scalar_select %p232, %s231, 0
        %p234 = scmp.lt.s32.totalorder %s233, 0
        %s235 = scalar_select %p234, %s233, 0
        %s236 = smul.addr %s235, 8
        %s237 = scalar_lea.vmem %s0, %s236
        %p238 = pneg %p59
        %p239 = pneg %p56
        %s240 = sand.u32 %s78, 1
        %s241 = scalar_lea.sflag [#allocation4], %s240
        %s242 = sand.u32 %s78, 1
        %s243 = smul.addr %s242, 8
        %s244 = scalar_lea.vmem [#allocation3], %s243
        %p245 = pneg %p91
        %p246 = pneg %p88
        %s247 = sadd.s32 %s24, %s25
        %p248 = scmp.lt.s32.totalorder %s247, 0
        %s249 = scalar_select %p248, %s247, 0
        %p250 = scmp.lt.s32.totalorder %s249, 0
        %s251 = scalar_select %p250, %s249, 0
        %s252 = smul.addr %s251, 8
        %s253 = scalar_lea.vmem %s2, %s252
        %p254 = pneg %p123
        %p255 = pneg %p120
        %p256 = pneg %p149
        %p257 = pneg %p146
        %s258 = sand.u32 %s136, 1
        %s259 = scalar_lea.sflag [#allocation5], %s258
        %s260 = sand.u32 %s136, 1
        %s261 = smul.addr %s260, 8
        %s262 = scalar_lea.vmem [#allocation6], %s261
        %s263 = sadd.s32 %s24, %s25
        %p264 = scmp.lt.s32.totalorder %s263, 0
        %s265 = scalar_select %p264, %s263, 0
        %p266 = scmp.lt.s32.totalorder %s265, 0
        %s267 = scalar_select %p266, %s265, 0
        %s268 = smul.addr %s267, 8
        %s269 = scalar_lea.vmem %s0, %s268
        %s270 = sadd.s32 %s24, %s25
        %p271 = scmp.lt.s32.totalorder %s270, 0
        %s272 = scalar_select %p271, %s270, 0
        %s273 = sadd.s32 %s24, %s25
        %p274 = scmp.lt.s32.totalorder %s273, 0
        %s275 = scalar_select %p274, %s273, 0
        %s276 = sadd.s32 %s24, %s25
        %p277 = scmp.lt.s32.totalorder %s276, 0
        %s278 = scalar_select %p277, %s276, 0
        %p279 = scmp.lt.s32.totalorder %s278, 0
        %s280 = scalar_select %p279, %s278, 0
        %s281 = smul.addr %s280, 8
        %s282 = scalar_lea.vmem %s2, %s281
        %s283 = sadd.s32 %s24, %s25
        %p284 = scmp.lt.s32.totalorder %s283, 0
        %s285 = scalar_select %p284, %s283, 0
        %s286 = sadd.s32 %s24, %s25
        %s287 = smul.u32 %s286, 8
        %p288 = scmp.eq.s32.totalorder %s25, 0
        // Predicated region
        $region37: #{tpu_custom_call.1} parent=31 // pred_check
          %p289 = pneg %p288
        $region38: #{tpu_custom_call.1} parent=31 // pred_check_branch
          %291 = sbr.rel (%p289) target = $region40
        $region39: #{tpu_custom_call.1} parent=31 // pred_region
          %vm292 = vcmask 7168
          %293 = vst.msk [vmem:[#allocation2] sm:$0xff] %vm292, 0.0
        $region40: #{tpu_custom_call.1} parent=31 // pred_fallthru
          _
        %v294 = vld [vmem:[%s269] sm:$0xff]
        %v295 = vld [vmem:[%s226] sm:$0xff]
        %v296 = vld [vmem:[%s282] sm:$0xff]
        %v297 = vmul.f32 %v294, %v295
        %298 = vadd.xlane.f32.xlu0 %v297
        %v299 = vpop.xlane.xlu0 %298
        %v300 = vmul.f32 %v294, %v294
        %301 = vadd.xlane.f32.xlu0 %v300
        %v302 = vpop.xlane.xlu0 %301
        %v303 = vmul.f32 %v295, %v295
        %304 = vadd.xlane.f32.xlu0 %v303
        %v305 = vpop.xlane.xlu0 %304
        %v306 = vmax.f32 %v302, 1e-16
        %v307 = vrsqrt.pop %v306
        %v308 = vmul.f32 %v299, %v307
        %v309 = vmax.f32 %v305, 1e-16
        %v310 = vrsqrt.pop %v309
        %v311 = vmul.f32 %v308, %v310
        %vm312 = vcmp.gt.f32.partialorder %v296, 0.0
        %v313 = vsub.f32 1.0, %v311
        %v314 = vmax.f32 %v311, 0.0
        %v315 = vsel %vm312, %v313, %v314
        %s316 = sadd.s32 %s287, 8
        %p317 = scmp.le.s32.totalorder %s316, 8
        // Predicated region
        $region41: #{tpu_custom_call.1} parent=31 // pred_check
          %p318 = pneg %p317
        $region42: #{tpu_custom_call.1} parent=31 // pred_check_branch
          %320 = sbr.rel (%p318) target = $region44
        $region43: #{tpu_custom_call.1} parent=31 // pred_region
          %v321 = vld [vmem:[#allocation2] sm:$0xff]
          %v322 = vadd.f32 %v321, %v315
          %vm323 = vcmask 7168
          %324 = vst.msk [vmem:[#allocation2] sm:$0xff] %vm323, %v322
        $region44: #{tpu_custom_call.1} parent=31 // pred_fallthru
          _
        %p325 = scmp.gt.s32.totalorder %s316, 8
        // Predicated region
        $region45: #{tpu_custom_call.1} parent=31 // pred_check
          %p326 = pneg %p325
        $region46: #{tpu_custom_call.1} parent=31 // pred_check_branch
          %328 = sbr.rel (%p326) target = $region48
        $region47: #{tpu_custom_call.1} parent=31 // pred_region
          %v329 = vlaneseq
          %v330 = vshrl.u32 %v329, 7
          %v331 = vstv %s287
          %v332 = vadd.s32 %v331, %v330
          %v333 = vld [vmem:[#allocation2] sm:$0xff]
          %vm334 = vcmp.lt.s32.totalorder %v332, 8
          %v335 = vsel %vm334, %v315, 0.0
          %v336 = vadd.f32 %v333, %v335
          %vm337 = vcmask 7168
          %338 = vst.msk [vmem:[#allocation2] sm:$0xff] %vm337, %v336
        $region48: #{tpu_custom_call.1} parent=31 // pred_fallthru
          _
        // Predicated region
        $region49: #{tpu_custom_call.1} parent=31 // pred_check
          %p339 = pneg %p288
        $region50: #{tpu_custom_call.1} parent=31 // pred_check_branch
          %341 = sbr.rel (%p339) target = $region52
        $region51: #{tpu_custom_call.1} parent=31 // pred_region
          %v342 = vld [vmem:[#allocation2] sm:$0xff]
          %vm343 = vcmask 7168
          %v344 = vsel %vm343, %v342, 0.0
          %345 = vadd.xlane.f32.xlu0 %v344
          %v346 = vpop.xlane.xlu0 %345
          %v347 = vrot.slane %v346, 4
          %v348 = vadd.f32 %v346, %v347
          %v349 = vrot.slane %v348, 2
          %v350 = vadd.f32 %v348, %v349
          %v351 = vrot.slane %v350, 1
          %v352 = vadd.f32 %v350, %v351
          %s353 = vtos %v352
          %v354 = vstv %s353
          %355 = vst [vmem:[%s262] sm:$0xff] %v354
        $region52: #{tpu_custom_call.1} parent=31 // pred_fallthru
          _
        %s356 = sand.u32 %s136, 1
        %s357 = scalar_lea.sflag [#allocation5], %s356
        %s358 = sand.u32 %s136, 1
        %s359 = smul.addr %s358, 8
        %s360 = scalar_lea.vmem [#allocation6], %s359
        // Predicated region
        $region53: #{tpu_custom_call.1} parent=31 // pred_check
          %p361 = pneg %p146
        $region54: #{tpu_custom_call.1} parent=31 // pred_check_branch
          %363 = sbr.rel (%p361) target = $region56
        $region55: #{tpu_custom_call.1} parent=31 // pred_region
          %s365 = ssub.s32 128, 128
          %366 = vsyncadd %s357, %s365
          %s367 = smul.addr %s24, 128
          %s368 = scalar_lea.hbm %s3, %s367
          %s370 = sshll.u32 %s360, 4
          %s371 = int_to_ptr.vmem [resolvable:$true] %s370
          %373 = dma.vmem_to_hbm [thread:$0]  %s371, 128, %s368, %s357
        $region56: #{tpu_custom_call.1} parent=31 // pred_fallthru
          _
      $region32: #{tpu_custom_call.1} parent=5 // pred_fallthru
        _
      %p374 = scmp.le.s32.totalorder 2, %s15
      // Predicated region
      $region57: #{tpu_custom_call.1} parent=5 // pred_check
        %p375 = pneg %p374
      $region58: #{tpu_custom_call.1} parent=5 // pred_check_branch
        %377 = sbr.rel (%p375) target = $region60
      $region59: #{tpu_custom_call.1} parent=5 // pred_region
        %s378 = ssub.s32 %s15, 2
        // Predicated region
        $region61: #{tpu_custom_call.1} parent=59 // pred_check
          %p379 = pneg %p152
        $region62: #{tpu_custom_call.1} parent=59 // pred_check_branch
          %381 = sbr.rel (%p379) target = $region64
        $region63: #{tpu_custom_call.1} parent=59 // pred_region
          %s382 = sand.u32 %s137, 1
          %s383 = scalar_lea.sflag [#allocation5], %s382
          %s384 = sand.u32 %s137, 1
          %s385 = smul.addr %s384, 8
          %s386 = scalar_lea.vmem [#allocation6], %s385
          %387 = dma.done %s383, 128
        $region64: #{tpu_custom_call.1} parent=59 // pred_fallthru
          _
      $region60: #{tpu_custom_call.1} parent=5 // pred_fallthru
        _
    $region6: #{tpu_custom_call.1} parent=1 // loop_footer
      %s19 = sadd.s32 1, %s15
    $region7: #{tpu_custom_call.1} parent=1 // loop_footer_branch
      %14 = sbr.rel target = $region3
    $region8: #{tpu_custom_call.1} parent=1 // loop_exit
      _
    %388 = vsyncpa [#allocation4], 1
    %s389 = scalar_lea.sflag [#allocation4], 1
    %390 = vsyncpa %s389, 1
    %391 = vsyncpa [#allocation5], 1
    %s392 = scalar_lea.sflag [#allocation5], 1
    %393 = vsyncpa %s392, 1

</llo_original>
